<compile_context>
chip_gen: v7x
topology: tpu7x:2x2x1
jax: 0.10.0
libtpu: 0.0.40
codegen_flags: <defaults>
</compile_context>

<pallas_src>
import functools
import math

import jax
import jax.numpy as jnp
from jax.experimental import pallas as pl
from jax.experimental.pallas import tpu as pltpu


def _round_up(x, m):
    return (x + m - 1) // m * m


def _pick_batch_tile(bp, max_tile=256):
    """Largest multiple of 8 <= max_tile that divides bp (bp is a multiple of 8)."""
    tb = min(max_tile, bp)
    tb -= tb % 8
    while bp % tb != 0:
        tb -= 8
    return tb


_ACTIVATIONS = {
    'tanh': jnp.tanh,
    'relu': lambda x: jnp.maximum(x, 0.0),
    'sigmoid': jax.nn.sigmoid,
    'leakyrelu': lambda x: jnp.where(x >= 0, x, 0.25 * x),
    '2relu': lambda x: jnp.maximum(x, 0.0) ** 2,
    'trunrelu': lambda x: jnp.clip(x, 0.0, 1.0),
    'tanh_prime': lambda x: 1.0 - jnp.tanh(x) ** 2,
    'relu_prime': lambda x: (x >= 0).astype(jnp.float32),
}


# --------------------------------------------------------------------------
# Single-step dynamics kernel:
#   inside : y = act(x @ W_k + b_k)      outside : y = act(x) @ W_k + b_k
# W_k / b_k are selected by the BlockSpec index_map from the scalar-prefetch k
# (only the needed slice is DMA'd; it stays resident across the batch grid).
# --------------------------------------------------------------------------
def _dynamics_kernel(k_ref, w_ref, b_ref, x_ref, o_ref, *, inside, act):
    del k_ref  # consumed by the index_maps only
    x = x_ref[...].astype(jnp.float32)
    w = w_ref[...]                      # (Dp, Dp)
    b = b_ref[...]                      # (1, Dp), broadcasts over batch rows
    if inside:
        y = act(jnp.dot(x, w, preferred_element_type=jnp.float32) + b)
    else:
        y = jnp.dot(act(x), w, preferred_element_type=jnp.float32) + b
    o_ref[...] = y.astype(o_ref.dtype)


def dynamics_forward(k, w_stack, b_stack, x, *, inside=True, act=jnp.tanh,
                     max_batch_tile=256):
    """k: int32[1]; w_stack: (V, Dp, Dp); b_stack: (V, 1, Dp); x: (Bp, Dp)."""
    bp, dp = x.shape
    assert dp % 128 == 0 and bp % 8 == 0
    tb = _pick_batch_tile(bp, max_batch_tile)
    nb = bp // tb

    grid_spec = pltpu.PrefetchScalarGridSpec(
        num_scalar_prefetch=1,
        grid=(nb,),
        in_specs=[
            # only the k-th weight / bias slice is fetched (data-dep index_map)
            pl.BlockSpec((None, dp, dp), lambda b, k_ref: (k_ref[0], 0, 0)),
            pl.BlockSpec((None, 1, dp), lambda b, k_ref: (k_ref[0], 0, 0)),
            # batch tile of activations
            pl.BlockSpec((tb, dp), lambda b, k_ref: (b, 0)),
        ],
        out_specs=pl.BlockSpec((tb, dp), lambda b, k_ref: (b, 0)),
    )
    return pl.pallas_call(
        functools.partial(_dynamics_kernel, inside=inside, act=act),
        out_shape=jax.ShapeDtypeStruct((bp, dp), x.dtype),
        grid_spec=grid_spec,
        compiler_params=pltpu.CompilerParams(
            dimension_semantics=("parallel",)),
    )(k, w_stack, b_stack, x)


# --------------------------------------------------------------------------
# Fused explicit-Euler trajectory:  x <- x + dt * act(x @ W_{k(step)} + b)
# The whole solver loop runs in one pallas_call; the per-step weight slice is
# prefetched by the pipeline from the SMEM k-schedule (ks[s]).
# --------------------------------------------------------------------------
def _euler_traj_kernel(ksched_ref, w_ref, b_ref, x_ref, o_ref, *, dt, act):
    del ksched_ref  # consumed by the index_maps only
    step = pl.program_id(1)

    @pl.when(step == 0)
    def _():
        o_ref[...] = x_ref[...]          # load initial state into carried block

    x = o_ref[...].astype(jnp.float32)
    f = act(jnp.dot(x, w_ref[...], preferred_element_type=jnp.float32)
            + b_ref[...])
    o_ref[...] = (x + dt * f).astype(o_ref.dtype)


def euler_trajectory(k_sched, w_stack, b_stack, x0, dt, *, act=jnp.tanh,
                     max_batch_tile=256):
    """k_sched: int32[num_steps]; state carried in the resident output block."""
    bp, dp = x0.shape
    num_steps = k_sched.shape[0]
    assert dp % 128 == 0 and bp % 8 == 0
    tb = _pick_batch_tile(bp, max_batch_tile)
    nb = bp // tb

    grid_spec = pltpu.PrefetchScalarGridSpec(
        num_scalar_prefetch=1,
        grid=(nb, num_steps),            # step axis last (carried output block)
        in_specs=[
            # per-step weight / bias slice chosen by the prefetched schedule
            pl.BlockSpec((None, dp, dp), lambda b, s, ks: (ks[s], 0, 0)),
            pl.BlockSpec((None, 1, dp), lambda b, s, ks: (ks[s], 0, 0)),
            # initial state (invariant across the step axis)
            pl.BlockSpec((tb, dp), lambda b, s, ks: (b, 0)),
        ],
        out_specs=pl.BlockSpec((tb, dp), lambda b, s, ks: (b, 0)),
    )
    return pl.pallas_call(
        functools.partial(_euler_traj_kernel, dt=dt, act=act),
        out_shape=jax.ShapeDtypeStruct((bp, dp), x0.dtype),
        grid_spec=grid_spec,
        compiler_params=pltpu.CompilerParams(
            dimension_semantics=("parallel", "arbitrary")),
    )(k_sched, w_stack, b_stack, x0)


# --------------------------------------------------------------------------
# Module mirror
# --------------------------------------------------------------------------
class DynamicsPallas:
    """JAX/Pallas mirror of the PyTorch Dynamics module
    (architectures 'inside'/'outside'; 'bottleneck' not implemented)."""

    def __init__(self, input_dim, hidden_dim, non_linearity='tanh',
                 architecture='inside', T=10, num_vals=10, seed_params=1):
        if non_linearity not in _ACTIVATIONS:
            raise ValueError('Invalid activation function.')
        if architecture == 'bottleneck':
            # TODO(synk): bottleneck (fc1/fc3) branch not implemented.
            raise NotImplementedError("'bottleneck' architecture not implemented")
        if architecture not in ('inside', 'outside'):
            raise ValueError('Invalid architecture type.')
        self.input_dim = input_dim
        self.hidden_dim = hidden_dim
        self.T = T
        self.num_vals = num_vals
        self.inside = (architecture == 'inside')
        self.act = _ACTIVATIONS[non_linearity]
        self.dp = _round_up(input_dim, 128)      # lane-dense feature dim

        # Deterministic synthetic parameter init (PyTorch-Linear-like uniform
        # range 1/sqrt(fan_in)); NOT a checkpoint load.
        key = jax.random.PRNGKey(seed_params)
        kw, kb = jax.random.split(key)
        bound = 1.0 / math.sqrt(input_dim)
        # stored as (num_vals, D_in, D_out) == torch W.T stacked over time
        w = jax.random.uniform(kw, (num_vals, input_dim, input_dim),
                               minval=-bound, maxval=bound, dtype=jnp.float32)
        b = jax.random.uniform(kb, (num_vals, input_dim),
                               minval=-bound, maxval=bound, dtype=jnp.float32)
        self.w = w            # unpadded (reference path)
        self.b = b

        # zero-padded, lane-dense copies used by the kernels
        self.w_stack = (jnp.zeros((num_vals, self.dp, self.dp), jnp.float32)
                        .at[:, :input_dim, :input_dim].set(w))
        self.b_stack = (jnp.zeros((num_vals, 1, self.dp), jnp.float32)
                        .at[:, 0, :input_dim].set(b))

    def _time_index(self, t):
        delta_t = self.T / self.num_vals
        k = int(t / delta_t)                      # same host-side int() as torch
        return min(max(k, 0), self.num_vals - 1)

    def _pad_x(self, x):
        B, D = x.shape
        bp = _round_up(max(B, 8), 8)
        return jnp.zeros((bp, self.dp), x.dtype).at[:B, :D].set(x)

    def __call__(self, t, x):
        B, D = x.shape
        assert D == self.input_dim
        xp = self._pad_x(x)
        k_arr = jnp.full((1,), self._time_index(t), dtype=jnp.int32)
        out = dynamics_forward(k_arr, self.w_stack, self.b_stack, xp,
                               inside=self.inside, act=self.act)
        return out[:B, :D]

    def reference(self, t, x):
        """Pure-JAX reference for verification."""
        k = self._time_index(t)
        if self.inside:
            return self.act(x @ self.w[k] + self.b[k])
        return self.act(x) @ self.w[k] + self.b[k]

    # ---- fused solver loop: whole Euler trajectory in one pallas_call ----
    def trajectory(self, x0, num_steps):
        assert self.inside, "trajectory fusion implemented for 'inside' only"
        dt = self.T / num_steps
        k_sched = jnp.asarray([self._time_index(n * dt) for n in range(num_steps)],
                              dtype=jnp.int32)
        B, D = x0.shape
        xp = self._pad_x(x0)
        out = euler_trajectory(k_sched, self.w_stack, self.b_stack, xp, dt,
                               act=self.act)
        return out[:B, :D]

    def trajectory_reference(self, x0, num_steps):
        dt = self.T / num_steps
        x = x0
        for n in range(num_steps):
            k = self._time_index(n * dt)
            x = x + dt * self.act(x @ self.w[k] + self.b[k])
        return x


if __name__ == "__main__":
    # Small shapes consistent with the module: batch=8, input_dim=32
    B, D = 8, 32
    key = jax.random.PRNGKey(0)
    x = jax.random.normal(key, (B, D), dtype=jnp.float32)

    # default config: architecture='inside', non_linearity='tanh'
    model = DynamicsPallas(input_dim=D, hidden_dim=D, T=10, num_vals=10,
                           seed_params=1)

    # single dynamics evaluation (the module's forward)
    t = 3.7                                   # -> k = int(3.7 / 1.0) = 3
    out = jax.block_until_ready(model(t, x))
    ref = model.reference(t, x)
    assert out.shape == (B, D)
    assert jnp.allclose(out, ref, atol=1e-5, rtol=1e-5), "forward mismatch"

    # 'outside' architecture variant (relu) — same kernel, swapped order
    model_out = DynamicsPallas(input_dim=D, hidden_dim=D, non_linearity='relu',
                               architecture='outside', T=10, num_vals=10,
                               seed_params=1)
    out2 = jax.block_until_ready(model_out(t, x))
    ref2 = model_out.reference(t, x)
    assert jnp.allclose(out2, ref2, atol=1e-5, rtol=1e-5), "'outside' mismatch"

    # fused time-loop (explicit Euler over the dynamics) in one pallas_call
    num_steps = 10
    traj = jax.block_until_ready(model.trajectory(x, num_steps))
    traj_ref = model.trajectory_reference(x, num_steps)
    assert traj.shape == (B, D)
    assert jnp.allclose(traj, traj_ref, atol=1e-4, rtol=1e-4), "trajectory mismatch"

    print("KERNEL_OK")
</pallas_src>

<mosaic_0001>
module attributes {stable_mosaic.version = 11 : i64} {
  func.func @_dynamics_kernel(%arg0: i32, %arg1: memref<1xi32, #tpu.memory_space<smem>>, %arg2: memref<1x128x128xf32, #tpu.memory_space<vmem>>, %arg3: memref<1x1x128xf32, #tpu.memory_space<vmem>>, %arg4: memref<8x128xf32, #tpu.memory_space<vmem>>, %arg5: memref<8x128xf32, #tpu.memory_space<vmem>>) attributes {dimension_semantics = [#tpu.dimension_semantics<parallel>], iteration_bounds = array<i64: 1>, scalar_prefetch = 1 : i64, scratch_operands = 0 : i64, tpu.core_type = #tpu.core_type<tc>, window_params = [{transform_indices = @transform_0, window_bounds = array<i64: 1, 128, 128>}, {transform_indices = @transform_1, window_bounds = array<i64: 1, 1, 128>}, {transform_indices = @transform_2, window_bounds = array<i64: 8, 128>}, {transform_indices = @transform_3, window_bounds = array<i64: 8, 128>}]} {
    %c0 = arith.constant 0 : index
    %c0_0 = arith.constant 0 : index
    %0 = vector.load %arg4[%c0, %c0_0] : memref<8x128xf32, #tpu.memory_space<vmem>>, vector<8x128xf32>
    %c0_1 = arith.constant 0 : index
    %c0_2 = arith.constant 0 : index
    %c0_3 = arith.constant 0 : index
    %1 = vector.load %arg2[%c0_1, %c0_2, %c0_3] : memref<1x128x128xf32, #tpu.memory_space<vmem>>, vector<1x128x128xf32>
    %2 = vector.shape_cast %1 : vector<1x128x128xf32> to vector<128x128xf32>
    %c0_4 = arith.constant 0 : index
    %c0_5 = arith.constant 0 : index
    %c0_6 = arith.constant 0 : index
    %3 = vector.load %arg3[%c0_4, %c0_5, %c0_6] : memref<1x1x128xf32, #tpu.memory_space<vmem>>, vector<1x1x128xf32>
    %4 = vector.shape_cast %3 : vector<1x1x128xf32> to vector<1x128xf32>
    %cst = arith.constant dense<0.000000e+00> : vector<8x128xf32>
    %5 = tpu.matmul %0, %2, %cst {dimension_numbers = #tpu.dot_dimension_numbers<[1], [0], [0], [1], [0, 0, 1, 1], [], []>} : vector<8x128xf32>, vector<128x128xf32>, vector<8x128xf32> -> vector<8x128xf32>
    %6 = vector.broadcast %4 : vector<1x128xf32> to vector<8x128xf32>
    %7 = arith.addf %5, %6 : vector<8x128xf32>
    %8 = math.tanh %7 : vector<8x128xf32>
    %c0_7 = arith.constant 0 : index
    %c0_8 = arith.constant 0 : index
    %9 = vector.load %arg5[%c0_7, %c0_8] : memref<8x128xf32, #tpu.memory_space<vmem>>, vector<8x128xf32>
    tpu.vector_store %arg5[%c0_7, %c0_8], %8 {strides = array<i32>} : memref<8x128xf32, #tpu.memory_space<vmem>>, vector<8x128xf32>,
    return
  }
  func.func @transform_0(%arg0: i32, %arg1: memref<1xi32, #tpu.memory_space<smem>>) -> (i32, i32, i32) {
    %c0 = arith.constant 0 : index
    %0 = memref.load %arg1[%c0] : memref<1xi32, #tpu.memory_space<smem>>
    %c0_i32 = arith.constant 0 : i32
    %c0_i32_0 = arith.constant 0 : i32
    %c0_i32_1 = arith.constant 0 : i32
    return %0, %c0_i32, %c0_i32_0 : i32, i32, i32
  }
  func.func @transform_1(%arg0: i32, %arg1: memref<1xi32, #tpu.memory_space<smem>>) -> (i32, i32, i32) {
    %c0 = arith.constant 0 : index
    %0 = memref.load %arg1[%c0] : memref<1xi32, #tpu.memory_space<smem>>
    %c0_i32 = arith.constant 0 : i32
    %c0_i32_0 = arith.constant 0 : i32
    %c0_i32_1 = arith.constant 0 : i32
    return %0, %c0_i32, %c0_i32_0 : i32, i32, i32
  }
  func.func @transform_2(%arg0: i32, %arg1: memref<1xi32, #tpu.memory_space<smem>>) -> (i32, i32) {
    %c0_i32 = arith.constant 0 : i32
    %c0_i32_0 = arith.constant 0 : i32
    return %arg0, %c0_i32 : i32, i32
  }
  func.func @transform_3(%arg0: i32, %arg1: memref<1xi32, #tpu.memory_space<smem>>) -> (i32, i32) {
    %c0_i32 = arith.constant 0 : i32
    %c0_i32_0 = arith.constant 0 : i32
    return %arg0, %c0_i32 : i32, i32
  }
}

</mosaic_0001>

<llo_original>
// kernel: tpu_custom_call.1
$region0: #{tpu_custom_call.1}
  #allocation0 [shape = 'u32[]', space=smem, size = 0x4, offset = 0x4, fixed_abs, tag = 'smem constant byte address 0x4 - core index']
  #allocation1 [shape = 'u32[144,128]{1,0:T(1,128)}', space=vmem, size = 0x12000, scoped, tag = 'internal scratch']
  #allocation2 [shape = 's32[1]{0}', space=sflag, size = 0x4, scoped, tag = 'scoped memory for tpu_custom_call.1']
  #allocation3 [shape = 's32[1]{0:T(128)S(6)}', space=smem, size = 0x200, scoped, tag = 'prefetched SMEM operand 0']
  %s0 = inlined_call_operand.<no memory space> [shape: s32[1], index: 0, kind: input, shape index: {}]
  %s1 = inlined_call_operand.hbm [shape: f32[10,128,128], index: 1, kind: input, shape index: {}]
  %s2 = inlined_call_operand.hbm [shape: f32[10,1,128], index: 2, kind: input, shape index: {}]
  %s3 = inlined_call_operand.vmem [shape: f32[8,128], index: 3, kind: input, shape index: {}]
  %s4 = inlined_call_operand.hbm [shape: f32[8,128], index: 4, kind: output, shape index: {}]
  %s5 = sld [smem:[#allocation0]]
  $region30: #{tpu_custom_call.1} parent=0
    _
  %s7 = ssub.s32 1, %s5
  %s8 = scalar_select 0, %s7, %s5
  %9 = sst [smem:[#allocation3]] %s0
  $region1: #{tpu_custom_call.1} parent=0
    #allocation4 [shape = 'u8[65536]{0}', space=vmem, size = 0x10000, scoped, tag = 'input window, operand 1, single buffered']
    #allocation5 [shape = 's32[1]{0}', space=sflag, size = 0x4, scoped, tag = 'scoped memory for tpu_custom_call.1']
    #allocation6 [shape = 's32[1]{0}', space=sflag, size = 0x4, scoped, tag = 'scoped memory for tpu_custom_call.1']
    #allocation7 [shape = 'u8[512]{0}', space=vmem, size = 0x400, scoped, tag = 'input window, operand 2, single buffered']
    #allocation8 [shape = 's32[1]{0}', space=sflag, size = 0x4, scoped, tag = 'scoped memory for tpu_custom_call.1']
    #allocation9 [shape = 'u8[4096]{0}', space=vmem, size = 0x1000, scoped, tag = 'output window, operand 0, single buffered']
    %10 = vsyncpa [#allocation5], 0
    %11 = vsyncpa [#allocation8], 0
    %12 = vsyncpa [#allocation6], 0
    // Predicated region
    $region2: #{tpu_custom_call.1} parent=1 // pred_check
      _
    $region3: #{tpu_custom_call.1} parent=1 // pred_check_branch
      %14 = sbr.rel (0) target = $region5
    $region4: #{tpu_custom_call.1} parent=1 // pred_region
      %s15 = sld [smem:[#allocation3]]
      %s17 = ssub.s32 2048, 2048
      %18 = vsyncadd [#allocation5], %s17
      %s19 = smul.addr %s15, 16
      %s20 = smul.addr %s19, 128
      %s21 = scalar_lea.hbm %s1, %s20
      %s22 = sshll.u32 [#allocation4], 4
      %s23 = int_to_ptr.vmem [resolvable:$true] %s22
      %28 = dma.hbm_to_vmem [thread:$0]  %s21, 2048, %s23, [#allocation5], 128, 128, 8
    $region5: #{tpu_custom_call.1} parent=1 // pred_fallthru
      _
    // Predicated region
    $region6: #{tpu_custom_call.1} parent=1 // pred_check
      _
    $region7: #{tpu_custom_call.1} parent=1 // pred_check_branch
      %30 = sbr.rel (0) target = $region9
    $region8: #{tpu_custom_call.1} parent=1 // pred_region
      %s31 = sld [smem:[#allocation3]]
      %s33 = ssub.s32 16, 16
      %34 = vsyncadd [#allocation8], %s33
      %s35 = smul.addr %s31, 16
      %s36 = scalar_lea.hbm %s2, %s35
      %s38 = sshll.u32 [#allocation7], 4
      %s39 = int_to_ptr.vmem [resolvable:$true] %s38
      %41 = dma.hbm_to_vmem [thread:$0]  %s36, 16, %s39, [#allocation8]
    $region9: #{tpu_custom_call.1} parent=1 // pred_fallthru
      _
    // Predicated region
    $region10: #{tpu_custom_call.1} parent=1 // pred_check
      _
    $region11: #{tpu_custom_call.1} parent=1 // pred_check_branch
      %43 = sbr.rel (0) target = $region13
    $region12: #{tpu_custom_call.1} parent=1 // pred_region
      _
    $region13: #{tpu_custom_call.1} parent=1 // pred_fallthru
      _
    // Predicated region
    $region14: #{tpu_custom_call.1} parent=1 // pred_check
      _
    $region15: #{tpu_custom_call.1} parent=1 // pred_check_branch
      %45 = sbr.rel (0) target = $region17
    $region16: #{tpu_custom_call.1} parent=1 // pred_region
      %46 = dma.done [#allocation5], 2048
    $region17: #{tpu_custom_call.1} parent=1 // pred_fallthru
      _
    // Predicated region
    $region18: #{tpu_custom_call.1} parent=1 // pred_check
      _
    $region19: #{tpu_custom_call.1} parent=1 // pred_check_branch
      %48 = sbr.rel (0) target = $region21
    $region20: #{tpu_custom_call.1} parent=1 // pred_region
      %49 = dma.done [#allocation8], 16
    $region21: #{tpu_custom_call.1} parent=1 // pred_fallthru
      _
    %s50 = sld [smem:[#allocation3]]
    %s51 = sld [smem:[#allocation3]]
    %v52 = vld [vmem:[%s3] sm:$0xff]
    %v53 = vld [vmem:[#allocation4] sm:$0xff]
    %v54 = vld [vmem:[#allocation4 + $0x8] sm:$0xff]
    %v55 = vld [vmem:[#allocation4 + $0x10] sm:$0xff]
    %v56 = vld [vmem:[#allocation4 + $0x18] sm:$0xff]
    %v57 = vld [vmem:[#allocation4 + $0x20] sm:$0xff]
    %v58 = vld [vmem:[#allocation4 + $0x28] sm:$0xff]
    %v59 = vld [vmem:[#allocation4 + $0x30] sm:$0xff]
    %v60 = vld [vmem:[#allocation4 + $0x38] sm:$0xff]
    %v61 = vld [vmem:[#allocation4 + $0x40] sm:$0xff]
    %v62 = vld [vmem:[#allocation4 + $0x48] sm:$0xff]
    %v63 = vld [vmem:[#allocation4 + $0x50] sm:$0xff]
    %v64 = vld [vmem:[#allocation4 + $0x58] sm:$0xff]
    %v65 = vld [vmem:[#allocation4 + $0x60] sm:$0xff]
    %v66 = vld [vmem:[#allocation4 + $0x68] sm:$0xff]
    %v67 = vld [vmem:[#allocation4 + $0x70] sm:$0xff]
    %v68 = vld [vmem:[#allocation4 + $0x78] sm:$0xff]
    %v69 = vld [vmem:[#allocation7] sm:$0x1]
    %v71 = vlaneseq
    %v72 = vshrl.u32 %v71, 7
    %v73 = vsub.s32 0, %v72
    %v74 = vrot.slane %v69, %v73
    %76 = vmatprep.subr.mxu0 0.0
    %77 = vmatpush1.msra.mxu0 %v53
    %78 = vmatprep.subr.mxu0 0.0
    %79 = vmatpush1.msra.mxu0 %v54
    %80 = vmatprep.subr.mxu0 0.0
    %81 = vmatpush1.msra.mxu0 %v55
    %82 = vmatprep.subr.mxu0 0.0
    %83 = vmatpush1.msra.mxu0 %v56
    %84 = vmatprep.subr.mxu0 0.0
    %85 = vmatpush1.msra.mxu0 %v57
    %86 = vmatprep.subr.mxu0 0.0
    %87 = vmatpush1.msra.mxu0 %v58
    %88 = vmatprep.subr.mxu0 0.0
    %89 = vmatpush1.msra.mxu0 %v59
    %90 = vmatprep.subr.mxu0 0.0
    %91 = vmatpush1.msra.mxu0 %v60
    %92 = vmatprep.subr.mxu0 0.0
    %93 = vmatpush1.msra.mxu0 %v61
    %94 = vmatprep.subr.mxu0 0.0
    %95 = vmatpush1.msra.mxu0 %v62
    %96 = vmatprep.subr.mxu0 0.0
    %97 = vmatpush1.msra.mxu0 %v63
    %98 = vmatprep.subr.mxu0 0.0
    %99 = vmatpush1.msra.mxu0 %v64
    %100 = vmatprep.subr.mxu0 0.0
    %101 = vmatpush1.msra.mxu0 %v65
    %102 = vmatprep.subr.mxu0 0.0
    %103 = vmatpush1.msra.mxu0 %v66
    %104 = vmatprep.subr.mxu0 0.0
    %105 = vmatpush1.msra.mxu0 %v67
    %106 = vmatprep.subr.mxu0 0.0
    %107 = vmatpush1.msra.mxu0 %v68
    %108 = vmatprep.subr.mxu0 0.0
    %109 = vmatpush1.msra.mxu0 0.0
    %110 = vmatprep.subr.mxu0 0.0
    %111 = vmatpush1.msra.mxu0 0.0
    %112 = vmatprep.subr.mxu0 0.0
    %113 = vmatpush1.msra.mxu0 0.0
    %114 = vmatprep.subr.mxu0 0.0
    %115 = vmatpush1.msra.mxu0 0.0
    %116 = vmatprep.subr.mxu0 0.0
    %117 = vmatpush1.msra.mxu0 0.0
    %118 = vmatprep.subr.mxu0 0.0
    %119 = vmatpush1.msra.mxu0 0.0
    %120 = vmatprep.subr.mxu0 0.0
    %121 = vmatpush1.msra.mxu0 0.0
    %122 = vmatprep.subr.mxu0 0.0
    %123 = vmatpush1.msra.mxu0 0.0
    %124 = vmatprep.subr.mxu0 0.0
    %125 = vmatpush1.msra.mxu0 0.0
    %126 = vmatprep.subr.mxu0 0.0
    %127 = vmatpush1.msra.mxu0 0.0
    %128 = vmatprep.subr.mxu0 0.0
    %129 = vmatpush1.msra.mxu0 0.0
    %130 = vmatprep.subr.mxu0 0.0
    %131 = vmatpush1.msra.mxu0 0.0
    %132 = vmatprep.subr.mxu0 0.0
    %133 = vmatpush1.msra.mxu0 0.0
    %134 = vmatprep.subr.mxu0 0.0
    %135 = vmatpush1.msra.mxu0 0.0
    %136 = vmatprep.subr.mxu0 0.0
    %137 = vmatpush1.msra.mxu0 0.0
    %138 = vmatprep.subr.mxu0 0.0
    %139 = vmatpush1.msra.mxu0 0.0
    %140 = vmatprep.mubr.f32.mxu0 0.0
    %141 = vmatmul.mubr.f32.gmra.mrb[0].mxu0 %v52
    %v142 = vpop.f32.mrb[0].mxu0
    %v143 = vadd.f32 %v74, %v142
    %v144 = vpop.f32.mrb[0].mxu0
    %145 = vdwg.mxu0
    %v146 = vtanh.pop %v143
    %147 = vst [vmem:[#allocation9] sm:$0xff] %v146
    // Predicated region
    $region22: #{tpu_custom_call.1} parent=1 // pred_check
      _
    $region23: #{tpu_custom_call.1} parent=1 // pred_check_branch
      %149 = sbr.rel (0) target = $region25
    $region24: #{tpu_custom_call.1} parent=1 // pred_region
      %s151 = ssub.s32 128, 128
      %152 = vsyncadd [#allocation6], %s151
      %s154 = sshll.u32 [#allocation9], 4
      %s155 = int_to_ptr.vmem [resolvable:$true] %s154
      %157 = dma.vmem_to_hbm [thread:$0]  %s155, 128, %s4, [#allocation6]
    $region25: #{tpu_custom_call.1} parent=1 // pred_fallthru
      _
    // Predicated region
    $region26: #{tpu_custom_call.1} parent=1 // pred_check
      _
    $region27: #{tpu_custom_call.1} parent=1 // pred_check_branch
      %159 = sbr.rel (0) target = $region29
    $region28: #{tpu_custom_call.1} parent=1 // pred_region
      %160 = dma.done [#allocation6], 128
    $region29: #{tpu_custom_call.1} parent=1 // pred_fallthru
      _
    %161 = vsyncpa [#allocation5], 1
    %162 = vsyncpa [#allocation8], 1
    %163 = vsyncpa [#allocation6], 1

</llo_original>
